<compile_context>
chip_gen: v7x
topology: tpu7x:2x2x1
jax: 0.10.0
libtpu: 0.0.40
codegen_flags: <defaults>
</compile_context>

<pallas_src>
import jax
import jax.numpy as jnp
from jax.experimental import pallas as pl
from jax.experimental.pallas import tpu as pltpu


_INV_SQRT2 = 0.7071067811865476


def _gelu_f32(h):
    # Exact (erf-based) GELU in f32 — matches torch.nn.GELU() default.
    return 0.5 * h * (1.0 + jax.lax.erf(h * _INV_SQRT2))


def _mlp_kernel_accum_out(x_ref, wfc_ref, wproj_ref, o_ref):
    """f32 output: accumulate directly into the h-resident output block."""
    h_idx = pl.program_id(1)

    @pl.when(h_idx == 0)
    def _():
        o_ref[...] = jnp.zeros_like(o_ref)

    h = jnp.dot(x_ref[...], wfc_ref[...], preferred_element_type=jnp.float32)
    g = _gelu_f32(h).astype(wfc_ref.dtype)   # bf16 so the 2nd matmul hits bf16 MXU rate
    o_ref[...] += jnp.dot(g, wproj_ref[...], preferred_element_type=jnp.float32)
    # TODO(synk): dropout is identity (p=0.0 in the reference module); no RNG needed.


def _mlp_kernel_scratch(x_ref, wfc_ref, wproj_ref, o_ref, acc_ref):
    """Non-f32 output: f32 accumulator scratch + final downcast writeback."""
    h_idx = pl.program_id(1)

    @pl.when(h_idx == 0)
    def _():
        acc_ref[...] = jnp.zeros_like(acc_ref)

    h = jnp.dot(x_ref[...], wfc_ref[...], preferred_element_type=jnp.float32)
    g = _gelu_f32(h).astype(wfc_ref.dtype)
    acc_ref[...] += jnp.dot(g, wproj_ref[...], preferred_element_type=jnp.float32)

    @pl.when(h_idx == pl.num_programs(1) - 1)
    def _():
        o_ref[...] = acc_ref[...].astype(o_ref.dtype)


def _round_up(x, m):
    return ((x + m - 1) // m) * m


def _vmem_capacity_bytes():
    try:
        return int(pltpu.get_tpu_info().vmem_capacity_bytes)
    except Exception:
        return 64 * 1024 * 1024  # conservative (v7x-sized) fallback


def _default_tiles(vmem_cap):
    # v5e/v6e (128 MiB VMEM, lower HBM BW relative to MXU) need big m-tiles to
    # be MXU-bound; v7x (64 MiB VMEM, 3.2 TB/s HBM) only needs ~512.
    if vmem_cap >= 100 * 1024 * 1024:
        return 1024, 1024
    return 512, 512


def _footprint_bytes(tm, th, D, cbytes, obytes, use_scratch):
    f = 2 * tm * D * cbytes           # x tile, double-buffered
    f += 2 * D * th * cbytes          # w_fc tile, double-buffered
    f += 2 * th * D * cbytes          # w_proj tile, double-buffered
    f += 2 * tm * D * obytes          # output tile, double-buffered
    if use_scratch:
        f += tm * D * 4               # f32 accumulator scratch
    f += tm * th * (4 + cbytes)       # (tm, th) f32 matmul result + bf16 GELU copy
    return f


def mlp_pallas(x, w_fc, w_proj, *, tm=None, th=None,
               compute_dtype=jnp.bfloat16, out_dtype=None):
    """x: [B, T, D]; w_fc: [D, 4D]; w_proj: [4D, D] (weights stored [in, out]).

    Note: real model dims should have D as a multiple of 128 for full MXU/lane
    utilization; small D (like the toy config) runs correct but under-utilized.
    """
    B, T, D = x.shape
    H = w_fc.shape[1]
    assert w_fc.shape == (D, H) and w_proj.shape == (H, D)
    out_dtype = x.dtype if out_dtype is None else jnp.dtype(out_dtype)

    vmem_cap = _vmem_capacity_bytes()
    d_tm, d_th = _default_tiles(vmem_cap)
    tm = d_tm if tm is None else tm
    th = d_th if th is None else th

    M = B * T

    # --- row tile: multiple of 8, never larger than (padded) M --------------
    tm = min(tm, _round_up(M, 8))
    tm = max(8, (tm // 8) * 8)
    # Keep both v7x TensorCores busy: ensure >= 2 m-tiles when there is
    # enough work to split.
    if M >= 512 and pl.cdiv(M, tm) < 2:
        tm = _round_up(pl.cdiv(M, 2), 8)

    # --- hidden tile: multiple of 128; H zero-padded to a multiple of th ----
    th = min(th, _round_up(H, 128))
    th = max(128, (th // 128) * 128)

    # --- shrink tiles until the per-step footprint fits the VMEM budget -----
    use_scratch = out_dtype != jnp.dtype(jnp.float32)
    cbytes = jnp.dtype(compute_dtype).itemsize
    obytes = out_dtype.itemsize
    budget = int(0.85 * vmem_cap)
    while _footprint_bytes(tm, th, D, cbytes, obytes, use_scratch) > budget and th > 128:
        th = max(128, ((th // 2) // 128) * 128)
    while _footprint_bytes(tm, th, D, cbytes, obytes, use_scratch) > budget and tm > 8:
        tm = max(8, ((tm // 2) // 8) * 8)

    grid_m = pl.cdiv(M, tm)
    M_pad = grid_m * tm
    grid_h = pl.cdiv(H, th)
    H_pad = grid_h * th

    # --- prepare operands (cast only if needed; pad with zeros) -------------
    x2 = x.reshape(M, D)
    if x2.dtype != compute_dtype:
        x2 = x2.astype(compute_dtype)
    if M_pad != M:
        # Zero rows give zero output (gelu(0)=0, bias=False); sliced off below.
        x2 = jnp.pad(x2, ((0, M_pad - M), (0, 0)))

    wfc = w_fc if w_fc.dtype == compute_dtype else w_fc.astype(compute_dtype)
    wproj = w_proj if w_proj.dtype == compute_dtype else w_proj.astype(compute_dtype)
    if H_pad != H:
        # Zero hidden columns/rows contribute nothing to the output.
        wfc = jnp.pad(wfc, ((0, 0), (0, H_pad - H)))
        wproj = jnp.pad(wproj, ((0, H_pad - H), (0, 0)))

    # --- advisory cost (weights are re-streamed once per m-tile) ------------
    cost = pl.CostEstimate(
        flops=4 * M_pad * D * H_pad,            # two matmuls: 2*M*D*H each
        transcendentals=M_pad * H_pad,          # erf per hidden element
        bytes_accessed=(M_pad * D * cbytes                     # x
                        + grid_m * 2 * D * H_pad * cbytes      # w_fc + w_proj, per m-tile
                        + M_pad * D * obytes),                 # out
    )

    footprint = _footprint_bytes(tm, th, D, cbytes, obytes, use_scratch)
    vmem_limit = min(int(footprint * 1.25) + (1 << 20), budget)
    vmem_limit = max(vmem_limit, 16 * 1024 * 1024)

    kernel = _mlp_kernel_scratch if use_scratch else _mlp_kernel_accum_out
    scratch_shapes = [pltpu.VMEM((tm, D), jnp.float32)] if use_scratch else []

    out2 = pl.pallas_call(
        kernel,
        out_shape=jax.ShapeDtypeStruct((M_pad, D), out_dtype),
        grid_spec=pltpu.PrefetchScalarGridSpec(
            num_scalar_prefetch=0,
            grid=(grid_m, grid_h),
            in_specs=[
                pl.BlockSpec((tm, D), lambda i, h: (i, 0)),   # x tile (resident over h)
                pl.BlockSpec((D, th), lambda i, h: (0, h)),   # c_fc weight block
                pl.BlockSpec((th, D), lambda i, h: (h, 0)),   # c_proj weight block
            ],
            out_specs=pl.BlockSpec((tm, D), lambda i, h: (i, 0)),
            scratch_shapes=scratch_shapes,
        ),
        compiler_params=pltpu.CompilerParams(
            dimension_semantics=("parallel", "arbitrary"),
            vmem_limit_bytes=vmem_limit,
        ),
        cost_estimate=cost,
    )(x2, wfc, wproj)

    if M_pad != M:
        out2 = out2[:M]
    return out2.reshape(B, T, D)


def mlp_reference(x, w_fc, w_proj):
    h = jnp.einsum("btd,dh->bth", x, w_fc)
    g = 0.5 * h * (1.0 + jax.lax.erf(h / jnp.sqrt(2.0)))
    return jnp.einsum("bth,hd->btd", g, w_proj)


if __name__ == "__main__":
    d_model = 32
    hidden = 4 * d_model
    B, T = 2, 8

    key = jax.random.PRNGKey(0)
    kx, kfc, kproj = jax.random.split(key, 3)

    # nn.Linear(d, 4d) / nn.Linear(4d, d) weights, stored transposed [in, out].
    w_fc = (jax.random.normal(kfc, (d_model, hidden), dtype=jnp.float32)
            * (1.0 / jnp.sqrt(d_model)))
    w_proj = (jax.random.normal(kproj, (hidden, d_model), dtype=jnp.float32)
              * (1.0 / jnp.sqrt(hidden)))
    x = jax.random.normal(kx, (B, T, d_model), dtype=jnp.float32)

    # Persist params in bf16 ONCE (perf feedback: no per-call weight cast pass).
    w_fc_bf16 = w_fc.astype(jnp.bfloat16)
    w_proj_bf16 = w_proj.astype(jnp.bfloat16)

    out = mlp_pallas(x, w_fc_bf16, w_proj_bf16)
    jax.block_until_ready(out)

    ref = mlp_reference(x, w_fc, w_proj)
    assert out.shape == (B, T, d_model)
    assert out.dtype == x.dtype
    # bf16 matmul inputs with f32 accumulation -> relaxed tolerance vs f32 ref.
    assert jnp.allclose(out, ref, atol=5e-2, rtol=5e-2), "mismatch vs reference"

    print("KERNEL_OK")
</pallas_src>

<mosaic_0001>
module attributes {stable_mosaic.version = 11 : i64} {
  func.func @_mlp_kernel_accum_out(%arg0: i32, %arg1: i32, %arg2: memref<16x32xbf16, #tpu.memory_space<vmem>>, %arg3: memref<32x128xbf16, #tpu.memory_space<vmem>>, %arg4: memref<128x32xbf16, #tpu.memory_space<vmem>>, %arg5: memref<16x32xf32, #tpu.memory_space<vmem>>) attributes {dimension_semantics = [#tpu.dimension_semantics<parallel>, #tpu.dimension_semantics<arbitrary>], iteration_bounds = array<i64: 1, 1>, scalar_prefetch = 0 : i64, scratch_operands = 0 : i64, tpu.core_type = #tpu.core_type<tc>, window_params = [{transform_indices = @transform_0, window_bounds = array<i64: 16, 32>}, {transform_indices = @transform_1, window_bounds = array<i64: 32, 128>}, {transform_indices = @transform_2, window_bounds = array<i64: 128, 32>}, {transform_indices = @transform_3, window_bounds = array<i64: 16, 32>}]} {
    %c0_i32 = arith.constant 0 : i32
    %0 = arith.cmpi eq, %arg1, %c0_i32 : i32
    %1 = arith.extui %0 : i1 to i32
    %c0_i32_0 = arith.constant 0 : i32
    %2 = arith.cmpi ne, %1, %c0_i32_0 : i32
    scf.if %2 {
      %cst_14 = arith.constant 0.000000e+00 : f32
      %20 = vector.broadcast %cst_14 : f32 to vector<16x32xf32>
      %c0_15 = arith.constant 0 : index
      %c0_16 = arith.constant 0 : index
      %21 = vector.load %arg5[%c0_15, %c0_16] : memref<16x32xf32, #tpu.memory_space<vmem>>, vector<16x32xf32>
      tpu.vector_store %arg5[%c0_15, %c0_16], %20 {strides = array<i32>} : memref<16x32xf32, #tpu.memory_space<vmem>>, vector<16x32xf32>,
    } else {
    }
    %c0 = arith.constant 0 : index
    %c0_1 = arith.constant 0 : index
    %3 = vector.load %arg2[%c0, %c0_1] : memref<16x32xbf16, #tpu.memory_space<vmem>>, vector<16x32xbf16>
    %c0_2 = arith.constant 0 : index
    %c0_3 = arith.constant 0 : index
    %4 = vector.load %arg3[%c0_2, %c0_3] : memref<32x128xbf16, #tpu.memory_space<vmem>>, vector<32x128xbf16>
    %cst = arith.constant dense<0.000000e+00> : vector<16x128xf32>
    %5 = tpu.matmul %3, %4, %cst {dimension_numbers = #tpu.dot_dimension_numbers<[1], [0], [0], [1], [0, 0, 1, 1], [], []>} : vector<16x32xbf16>, vector<32x128xbf16>, vector<16x128xf32> -> vector<16x128xf32>
    %cst_4 = arith.constant 5.000000e-01 : f32
    %6 = vector.broadcast %cst_4 : f32 to vector<16x128xf32>
    %7 = arith.mulf %6, %5 : vector<16x128xf32>
    %cst_5 = arith.constant 0.707106769 : f32
    %8 = vector.broadcast %cst_5 : f32 to vector<16x128xf32>
    %9 = arith.mulf %5, %8 : vector<16x128xf32>
    %10 = math.erf %9 : vector<16x128xf32>
    %cst_6 = arith.constant 1.000000e+00 : f32
    %11 = vector.broadcast %cst_6 : f32 to vector<16x128xf32>
    %12 = arith.addf %11, %10 : vector<16x128xf32>
    %13 = arith.mulf %7, %12 : vector<16x128xf32>
    %14 = arith.truncf %13 : vector<16x128xf32> to vector<16x128xbf16>
    %c0_7 = arith.constant 0 : index
    %c0_8 = arith.constant 0 : index
    %15 = vector.load %arg5[%c0_7, %c0_8] : memref<16x32xf32, #tpu.memory_space<vmem>>, vector<16x32xf32>
    %c0_9 = arith.constant 0 : index
    %c0_10 = arith.constant 0 : index
    %16 = vector.load %arg4[%c0_9, %c0_10] : memref<128x32xbf16, #tpu.memory_space<vmem>>, vector<128x32xbf16>
    %cst_11 = arith.constant dense<0.000000e+00> : vector<16x32xf32>
    %17 = tpu.matmul %14, %16, %cst_11 {dimension_numbers = #tpu.dot_dimension_numbers<[1], [0], [0], [1], [0, 0, 1, 1], [], []>} : vector<16x128xbf16>, vector<128x32xbf16>, vector<16x32xf32> -> vector<16x32xf32>
    %18 = arith.addf %15, %17 : vector<16x32xf32>
    %c0_12 = arith.constant 0 : index
    %c0_13 = arith.constant 0 : index
    %19 = vector.load %arg5[%c0_12, %c0_13] : memref<16x32xf32, #tpu.memory_space<vmem>>, vector<16x32xf32>
    tpu.vector_store %arg5[%c0_12, %c0_13], %18 {strides = array<i32>} : memref<16x32xf32, #tpu.memory_space<vmem>>, vector<16x32xf32>,
    return
  }
  func.func @transform_0(%arg0: i32, %arg1: i32) -> (i32, i32) {
    %c0_i32 = arith.constant 0 : i32
    %c0_i32_0 = arith.constant 0 : i32
    return %arg0, %c0_i32 : i32, i32
  }
  func.func @transform_1(%arg0: i32, %arg1: i32) -> (i32, i32) {
    %c0_i32 = arith.constant 0 : i32
    %c0_i32_0 = arith.constant 0 : i32
    return %c0_i32, %arg1 : i32, i32
  }
  func.func @transform_2(%arg0: i32, %arg1: i32) -> (i32, i32) {
    %c0_i32 = arith.constant 0 : i32
    %c0_i32_0 = arith.constant 0 : i32
    return %arg1, %c0_i32 : i32, i32
  }
  func.func @transform_3(%arg0: i32, %arg1: i32) -> (i32, i32) {
    %c0_i32 = arith.constant 0 : i32
    %c0_i32_0 = arith.constant 0 : i32
    return %arg0, %c0_i32 : i32, i32
  }
}

</mosaic_0001>

<llo_original>
// kernel: tpu_custom_call.1
$region0: #{tpu_custom_call.1}
  #allocation0 [shape = 'u32[]', space=smem, size = 0x4, offset = 0x4, fixed_abs, tag = 'smem constant byte address 0x4 - core index']
  #allocation1 [shape = 'u32[144,128]{1,0:T(1,128)}', space=vmem, size = 0x12000, scoped, tag = 'internal scratch']
  %s0 = inlined_call_operand.vmem [shape: bf16[16,32], index: 0, kind: input, shape index: {}]
  %s1 = inlined_call_operand.vmem [shape: bf16[32,128], index: 1, kind: input, shape index: {}]
  %s2 = inlined_call_operand.vmem [shape: bf16[128,32], index: 2, kind: input, shape index: {}]
  %s3 = inlined_call_operand.hbm [shape: f32[16,32], index: 3, kind: output, shape index: {}]
  %s4 = sld [smem:[#allocation0]]
  $region26: #{tpu_custom_call.1} parent=0
    _
  %s6 = ssub.s32 1, %s4
  %s7 = scalar_select 0, %s6, %s4
  $region1: #{tpu_custom_call.1} parent=0
    #allocation2 [shape = 'u8[8192]{0}', space=vmem, size = 0x2000, scoped, tag = 'output window, operand 0, single buffered']
    #allocation3 [shape = 's32[1]{0}', space=sflag, size = 0x4, scoped, tag = 'scoped memory for tpu_custom_call.1']
    %8 = vsyncpa [#allocation3], 0
    // Predicated region
    $region2: #{tpu_custom_call.1} parent=1 // pred_check
      _
    $region3: #{tpu_custom_call.1} parent=1 // pred_check_branch
      %10 = sbr.rel (0) target = $region5
    $region4: #{tpu_custom_call.1} parent=1 // pred_region
      _
    $region5: #{tpu_custom_call.1} parent=1 // pred_fallthru
      _
    // Predicated region
    $region6: #{tpu_custom_call.1} parent=1 // pred_check
      _
    $region7: #{tpu_custom_call.1} parent=1 // pred_check_branch
      %12 = sbr.rel (0) target = $region9
    $region8: #{tpu_custom_call.1} parent=1 // pred_region
      _
    $region9: #{tpu_custom_call.1} parent=1 // pred_fallthru
      _
    // Predicated region
    $region10: #{tpu_custom_call.1} parent=1 // pred_check
      _
    $region11: #{tpu_custom_call.1} parent=1 // pred_check_branch
      %14 = sbr.rel (0) target = $region13
    $region12: #{tpu_custom_call.1} parent=1 // pred_region
      _
    $region13: #{tpu_custom_call.1} parent=1 // pred_fallthru
      _
    %p16 = scmp.eq.s32.totalorder 0, 0
    // Predicated region
    $region14: #{tpu_custom_call.1} parent=1 // pred_check
      %p17 = pneg %p16
    $region15: #{tpu_custom_call.1} parent=1 // pred_check_branch
      %19 = sbr.rel (%p17) target = $region17
    $region16: #{tpu_custom_call.1} parent=1 // pred_region
      %vm20 = vcmask 261120
      %21 = vst.msk [vmem:[#allocation2] sm:$0xff] %vm20, 0.0
      %22 = vst.msk [vmem:[#allocation2 + $0x8] sm:$0xff] %vm20, 0.0
    $region17: #{tpu_custom_call.1} parent=1 // pred_fallthru
      _
    %v23 = vld [vmem:[%s0] sm:$0xf]
    %v24 = vld [vmem:[%s0 + $0x4] sm:$0xf]
    %v25 = vld [vmem:[%s1] sm:$0xf]
    %v26 = vld [vmem:[%s1 + $0x4] sm:$0xf]
    %v27 = vld [vmem:[%s1 + $0x8] sm:$0xf]
    %v28 = vld [vmem:[%s1 + $0xc] sm:$0xf]
    %v31 = vunpack.c.l.b16 %v23
    %v32 = vunpack.c.l.b16 %v24
    %v33 = vpack.c.b16 %v32, %v31
    %v38 = vunpack.c.l.b16 %v25
    %v39 = vunpack.c.l.b16 %v26
    %v40 = vunpack.c.l.b16 %v27
    %v41 = vunpack.c.l.b16 %v28
    %v42 = vpack.c.b16 %v39, %v38
    %v43 = vpack.c.b16 %v41, %v40
    %vm46 = vcmask 261120
    %v48 = vsel %vm46, %v33, 0
    %50 = vmatprep.subr.bf16.mxu0 0
    %51 = vmatpush1.bf16.msra.mxu0 %v42
    %52 = vmatprep.subr.bf16.mxu0 0
    %53 = vmatpush1.bf16.msra.mxu0 %v43
    %54 = vmatprep.subr.bf16.mxu0 0
    %55 = vmatpush1.bf16.msra.mxu0 0
    %56 = vmatprep.subr.bf16.mxu0 0
    %57 = vmatpush1.bf16.msra.mxu0 0
    %58 = vmatprep.subr.bf16.mxu0 0
    %59 = vmatpush1.bf16.msra.mxu0 0
    %60 = vmatprep.subr.bf16.mxu0 0
    %61 = vmatpush1.bf16.msra.mxu0 0
    %62 = vmatprep.subr.bf16.mxu0 0
    %63 = vmatpush1.bf16.msra.mxu0 0
    %64 = vmatprep.subr.bf16.mxu0 0
    %65 = vmatpush1.bf16.msra.mxu0 0
    %66 = vmatprep.subr.bf16.mxu0 0
    %67 = vmatpush1.bf16.msra.mxu0 0
    %68 = vmatprep.subr.bf16.mxu0 0
    %69 = vmatpush1.bf16.msra.mxu0 0
    %70 = vmatprep.subr.bf16.mxu0 0
    %71 = vmatpush1.bf16.msra.mxu0 0
    %72 = vmatprep.subr.bf16.mxu0 0
    %73 = vmatpush1.bf16.msra.mxu0 0
    %74 = vmatprep.subr.bf16.mxu0 0
    %75 = vmatpush1.bf16.msra.mxu0 0
    %76 = vmatprep.subr.bf16.mxu0 0
    %77 = vmatpush1.bf16.msra.mxu0 0
    %78 = vmatprep.subr.bf16.mxu0 0
    %79 = vmatpush1.bf16.msra.mxu0 0
    %80 = vmatprep.subr.bf16.mxu0 0
    %81 = vmatpush1.bf16.msra.mxu0 0
    %82 = vmatprep.mubr.bf16.mxu0 0
    %83 = vmatmul.mubr.bf16.gmra.mrb[0].mxu0 %v48
    %v84 = vpop.f32.mrb[0].mxu0
    %v85 = vadd.f32 0.0, %v84
    %v86 = vpop.f32.mrb[0].mxu0
    %v87 = vpop.f32.mrb[0].mxu0
    %v88 = vadd.f32 0.0, %v87
    %v89 = vpop.f32.mrb[0].mxu0
    %90 = vdwg.mxu0
    %v91 = vmul.f32 %v85, 0.5
    %v92 = vmul.f32 %v88, 0.5
    %v93 = vmul.f32 %v85, 0.70710677
    %v94 = vmul.f32 %v88, 0.70710677
    %v95 = verf.f32.pop %v93
    %v96 = verf.f32.pop %v94
    %v97 = vadd.f32 %v95, 1.0
    %v98 = vadd.f32 %v96, 1.0
    %v99 = vmul.f32 %v91, %v97
    %v100 = vmul.f32 %v92, %v98
    %v101 = vpack.c.bf16 %v100, %v99
    %v102 = vld [vmem:[#allocation2] sm:$0xff]
    %v103 = vld [vmem:[#allocation2 + $0x8] sm:$0xff]
    %v104 = vld [vmem:[%s2] sm:$0xf]
    %v105 = vld [vmem:[%s2 + $0x4] sm:$0xf]
    %v106 = vld [vmem:[%s2 + $0x8] sm:$0xf]
    %v107 = vld [vmem:[%s2 + $0xc] sm:$0xf]
    %v108 = vld [vmem:[%s2 + $0x10] sm:$0xf]
    %v109 = vld [vmem:[%s2 + $0x14] sm:$0xf]
    %v110 = vld [vmem:[%s2 + $0x18] sm:$0xf]
    %v111 = vld [vmem:[%s2 + $0x1c] sm:$0xf]
    %v112 = vld [vmem:[%s2 + $0x20] sm:$0xf]
    %v113 = vld [vmem:[%s2 + $0x24] sm:$0xf]
    %v114 = vld [vmem:[%s2 + $0x28] sm:$0xf]
    %v115 = vld [vmem:[%s2 + $0x2c] sm:$0xf]
    %v116 = vld [vmem:[%s2 + $0x30] sm:$0xf]
    %v117 = vld [vmem:[%s2 + $0x34] sm:$0xf]
    %v118 = vld [vmem:[%s2 + $0x38] sm:$0xf]
    %v119 = vld [vmem:[%s2 + $0x3c] sm:$0xf]
    %v136 = vunpack.c.l.b16 %v104
    %v137 = vunpack.c.l.b16 %v105
    %v138 = vunpack.c.l.b16 %v106
    %v139 = vunpack.c.l.b16 %v107
    %v140 = vunpack.c.l.b16 %v108
    %v141 = vunpack.c.l.b16 %v109
    %v142 = vunpack.c.l.b16 %v110
    %v143 = vunpack.c.l.b16 %v111
    %v144 = vunpack.c.l.b16 %v112
    %v145 = vunpack.c.l.b16 %v113
    %v146 = vunpack.c.l.b16 %v114
    %v147 = vunpack.c.l.b16 %v115
    %v148 = vunpack.c.l.b16 %v116
    %v149 = vunpack.c.l.b16 %v117
    %v150 = vunpack.c.l.b16 %v118
    %v151 = vunpack.c.l.b16 %v119
    %v152 = vpack.c.b16 %v137, %v136
    %v153 = vpack.c.b16 %v139, %v138
    %v154 = vpack.c.b16 %v141, %v140
    %v155 = vpack.c.b16 %v143, %v142
    %v156 = vpack.c.b16 %v145, %v144
    %v157 = vpack.c.b16 %v147, %v146
    %v158 = vpack.c.b16 %v149, %v148
    %v159 = vpack.c.b16 %v151, %v150
    %168 = vmatprep.subr.bf16.mxu0 0
    %169 = vmatpush1.bf16.msra.mxu0 %v152
    %170 = vmatprep.subr.bf16.mxu0 0
    %171 = vmatpush1.bf16.msra.mxu0 %v153
    %172 = vmatprep.subr.bf16.mxu0 0
    %173 = vmatpush1.bf16.msra.mxu0 %v154
    %174 = vmatprep.subr.bf16.mxu0 0
    %175 = vmatpush1.bf16.msra.mxu0 %v155
    %176 = vmatprep.subr.bf16.mxu0 0
    %177 = vmatpush1.bf16.msra.mxu0 %v156
    %178 = vmatprep.subr.bf16.mxu0 0
    %179 = vmatpush1.bf16.msra.mxu0 %v157
    %180 = vmatprep.subr.bf16.mxu0 0
    %181 = vmatpush1.bf16.msra.mxu0 %v158
    %182 = vmatprep.subr.bf16.mxu0 0
    %183 = vmatpush1.bf16.msra.mxu0 %v159
    %184 = vmatprep.subr.bf16.mxu0 0
    %185 = vmatpush1.bf16.msra.mxu0 0
    %186 = vmatprep.subr.bf16.mxu0 0
    %187 = vmatpush1.bf16.msra.mxu0 0
    %188 = vmatprep.subr.bf16.mxu0 0
    %189 = vmatpush1.bf16.msra.mxu0 0
    %190 = vmatprep.subr.bf16.mxu0 0
    %191 = vmatpush1.bf16.msra.mxu0 0
    %192 = vmatprep.subr.bf16.mxu0 0
    %193 = vmatpush1.bf16.msra.mxu0 0
    %194 = vmatprep.subr.bf16.mxu0 0
    %195 = vmatpush1.bf16.msra.mxu0 0
    %196 = vmatprep.subr.bf16.mxu0 0
    %197 = vmatpush1.bf16.msra.mxu0 0
    %198 = vmatprep.subr.bf16.mxu0 0
    %199 = vmatpush1.bf16.msra.mxu0 0
    %200 = vmatprep.mubr.bf16.mxu0 0
    %201 = vmatmul.mubr.bf16.gmra.mrb[0].mxu0 %v101
    %v202 = vpop.f32.mrb[0].mxu0
    %v203 = vadd.f32 0.0, %v202
    %v204 = vpop.f32.mrb[0].mxu0
    %v205 = vpop.f32.mrb[0].mxu0
    %v206 = vadd.f32 0.0, %v205
    %v207 = vpop.f32.mrb[0].mxu0
    %208 = vdwg.mxu0
    %v209 = vadd.f32 %v102, %v203
    %v210 = vadd.f32 %v103, %v206
    %211 = vst.msk [vmem:[#allocation2] sm:$0xff] %vm46, %v209
    %212 = vst.msk [vmem:[#allocation2 + $0x8] sm:$0xff] %vm46, %v210
    // Predicated region
    $region18: #{tpu_custom_call.1} parent=1 // pred_check
      _
    $region19: #{tpu_custom_call.1} parent=1 // pred_check_branch
      %214 = sbr.rel (0) target = $region21
    $region20: #{tpu_custom_call.1} parent=1 // pred_region
      %s216 = ssub.s32 256, 256
      %217 = vsyncadd [#allocation3], %s216
      %s218 = sshll.u32 [#allocation2], 4
      %s219 = int_to_ptr.vmem [resolvable:$true] %s218
      %224 = dma.vmem_to_hbm [thread:$0]  %s219, 256, %s3, [#allocation3], 128, 128, 8
    $region21: #{tpu_custom_call.1} parent=1 // pred_fallthru
      _
    // Predicated region
    $region22: #{tpu_custom_call.1} parent=1 // pred_check
      _
    $region23: #{tpu_custom_call.1} parent=1 // pred_check_branch
      %226 = sbr.rel (0) target = $region25
    $region24: #{tpu_custom_call.1} parent=1 // pred_region
      %227 = dma.done [#allocation3], 256
    $region25: #{tpu_custom_call.1} parent=1 // pred_fallthru
      _
    %228 = vsyncpa [#allocation3], 1

</llo_original>
